<compile_context>
chip_gen: v7x
topology: tpu7x:2x2x1
jax: 0.10.0
libtpu: 0.0.40
codegen_flags: <defaults>
</compile_context>

<pallas_src>
import functools

import jax
import jax.numpy as jnp
from jax.experimental import pallas as pl
from jax.experimental.pallas import tpu as pltpu


def _build_pe(seq_len: int, d_model: int) -> jnp.ndarray:
    """Buffer setup matching the PyTorch __init__ (plain JAX glue)."""
    position = jnp.arange(seq_len, dtype=jnp.float32)[:, None]          # (S, 1)
    _2i = jnp.arange(0, d_model, 2, dtype=jnp.float32)                  # (D/2,)
    div = jnp.power(10000.0, _2i / float(d_model))                      # (D/2,)
    angles = position / div                                             # (S, D/2)
    pe = jnp.zeros((seq_len, d_model), dtype=jnp.float32)
    pe = pe.at[:, 0::2].set(jnp.sin(angles))
    pe = pe.at[:, 1::2].set(jnp.cos(angles))
    return pe[None, :, :]                                               # (1, S, D)


def _largest_divisor_mult8(n: int, cap: int) -> int:
    """Largest divisor of n that is a multiple of 8 and <= cap (assumes n % 8 == 0)."""
    for t in range(min(cap, n), 7, -1):
        if n % t == 0 and t % 8 == 0:
            return t
    return 8


def _pick_batch_fold(batch: int, rows: int, target: int) -> int:
    """Largest divisor k of batch with k*rows <= target, preferring >= 2 grid steps."""
    divisors = [d for d in range(1, batch + 1) if batch % d == 0]
    fits = [d for d in divisors if d * rows <= target]
    if not fits:
        return 1
    two_step = [d for d in fits if batch // d >= 2]                     # keep v7x megacore busy
    return max(two_step) if two_step else max(fits)


def _pe_add_kernel(seed_ref, x_ref, pe_ref, o_ref):
    """Eval / p == 0 path: pure broadcast add, fully memory-bound."""
    o_ref[...] = (x_ref[...] + pe_ref[...]).astype(o_ref.dtype)


def _pe_add_dropout_kernel(seed_ref, x_ref, pe_ref, idx_ref, o_ref, *,
                           keep_threshold: int, inv_keep: float, tile_elems: int):
    """Training path: add PE then inverted dropout via a 2-round counter hash."""
    y = x_ref[...] + pe_ref[...]
    # Global flat element index (tiling-independent): resident precomputed tile + scalar base.
    base = (pl.program_id(0) * tile_elems).astype(jnp.uint32)
    idx = idx_ref[...].astype(jnp.uint32) + base
    seed = seed_ref[0].astype(jnp.uint32)
    # 2-round lowbias32-style hash: pure 32-bit VPU integer ops.
    h = idx * jnp.uint32(0x9E3779B1) + seed
    h = h ^ (h >> 16)
    h = h * jnp.uint32(0x7FEB352D)
    h = h ^ (h >> 15)
    keep = h >= jnp.uint32(keep_threshold)                              # P(keep) = 1 - p
    o_ref[...] = jnp.where(keep, y * jnp.float32(inv_keep), 0.0).astype(o_ref.dtype)


def positional_encoding(x: jnp.ndarray, pe: jnp.ndarray, *, p: float,
                        training: bool, seed: int = 0,
                        row_tile_target: int = 1024) -> jnp.ndarray:
    """x: (B, S, D); pe: (1, S_max, D) with S <= S_max.  Matches module.forward()."""
    B, S, D = x.shape
    _, S_max, D_pe = pe.shape
    assert D_pe == D and S <= S_max
    p = float(p)
    use_dropout = bool(training) and p > 0.0
    if use_dropout and p >= 1.0:
        return jnp.zeros_like(x)    # torch Dropout(p=1.0) zeroes everything

    # ---- Lane-dense flatten: per-batch slab padded to R*128 floats (R multiple of 8).
    flat = S * D
    rows = -(-flat // 128)
    rows = ((rows + 7) // 8) * 8
    pad = rows * 128 - flat
    x_flat = x.reshape(B, flat)
    pe_flat = pe[0, :S, :].reshape(1, flat).astype(x.dtype)
    if pad:
        x_flat = jnp.pad(x_flat, ((0, 0), (0, pad)))
        pe_flat = jnp.pad(pe_flat, ((0, 0), (0, pad)))
    x_rows = x_flat.reshape(B * rows, 128)
    pe_rows = pe_flat.reshape(rows, 128)

    # ---- Tile selection (fold batch into rows; keep PE aligned to tile boundaries).
    if rows > row_tile_target:
        tile_r = _largest_divisor_mult8(rows, row_tile_target)          # tile inside one batch
        pe_view = pe_rows
        n_pe_blocks = rows // tile_r
    else:
        k = _pick_batch_fold(B, rows, row_tile_target)                  # k batches per tile
        tile_r = k * rows
        pe_view = jnp.tile(pe_rows, (k, 1)) if k > 1 else pe_rows
        n_pe_blocks = 1

    total_rows = B * rows
    grid = (total_rows // tile_r,)
    pe_idx = ((lambda i, seed: (0, 0)) if n_pe_blocks == 1
              else (lambda i, seed: (i % n_pe_blocks, 0)))

    in_specs = [
        pl.BlockSpec((tile_r, 128), lambda i, seed: (i, 0)),            # x rows
        pl.BlockSpec((tile_r, 128), pe_idx),                            # PE (reused / resident)
    ]
    operands = [x_rows, pe_view]

    if use_dropout:
        # Precomputed in-tile flat-index pattern; constant block index -> VMEM-resident.
        idx_tile = jnp.arange(tile_r * 128, dtype=jnp.int32).reshape(tile_r, 128)
        in_specs.append(pl.BlockSpec((tile_r, 128), lambda i, seed: (0, 0)))
        operands.append(idx_tile)
        threshold = min(0xFFFFFFFF, max(1, int(round(p * 4294967296.0))))
        kernel = functools.partial(
            _pe_add_dropout_kernel, keep_threshold=threshold,
            inv_keep=1.0 / (1.0 - p), tile_elems=tile_r * 128)
    else:
        kernel = _pe_add_kernel

    elem_bytes = x_rows.dtype.itemsize
    bytes_accessed = (2 * x_rows.size + pe_view.size) * elem_bytes
    if use_dropout:
        bytes_accessed += tile_r * 128 * 4

    seed_arr = jnp.array([seed], dtype=jnp.int32)
    out = pl.pallas_call(
        kernel,
        out_shape=jax.ShapeDtypeStruct((total_rows, 128), x.dtype),
        grid_spec=pltpu.PrefetchScalarGridSpec(
            num_scalar_prefetch=1,
            grid=grid,
            in_specs=in_specs,
            out_specs=pl.BlockSpec((tile_r, 128), lambda i, seed: (i, 0)),
        ),
        compiler_params=pltpu.CompilerParams(
            dimension_semantics=("parallel",)),
        cost_estimate=pl.CostEstimate(
            flops=x_rows.size * (10 if use_dropout else 1),
            transcendentals=0,
            bytes_accessed=int(bytes_accessed)),
    )(seed_arr, *operands)

    out = out.reshape(B, rows * 128)
    if pad:
        out = out[:, :flat]
    return out.reshape(B, S, D)


if __name__ == "__main__":
    d_model = 32
    seq_len_max = 16
    dropout_p = 0.1
    batch, seq = 2, 8

    key = jax.random.PRNGKey(0)
    x = jax.random.normal(key, (batch, seq, d_model), dtype=jnp.float32)
    pe = _build_pe(seq_len_max, d_model)
    ref = x + pe[:, :seq, :]

    # Eval-mode forward (dropout identity); D < 128 exercises the lane-dense pad path.
    out_eval = jax.block_until_ready(
        positional_encoding(x, pe, p=dropout_p, training=False))
    assert jnp.allclose(out_eval, ref, atol=1e-6), "eval mismatch vs reference"

    # Training-mode forward (inverted dropout, deterministic counter-hash mask).
    out_train = jax.block_until_ready(
        positional_encoding(x, pe, p=dropout_p, training=True, seed=123))
    scaled = ref / (1.0 - dropout_p)
    ok = jnp.isclose(out_train, 0.0, atol=1e-6) | jnp.isclose(out_train, scaled, atol=1e-5)
    assert bool(jnp.all(ok)), "train outputs not in {0, (x+pe)/(1-p)}"

    # Lane-aligned shape (D = 128): exercises the pad-free batch-folding path.
    d2 = 128
    x2 = jax.random.normal(jax.random.PRNGKey(1), (batch, seq, d2), dtype=jnp.float32)
    pe2 = _build_pe(seq_len_max, d2)
    out2 = jax.block_until_ready(
        positional_encoding(x2, pe2, p=dropout_p, training=False))
    assert jnp.allclose(out2, x2 + pe2[:, :seq, :], atol=1e-6), "aligned-path mismatch"

    # Large-R mode (tiles inside a batch element, PE reused via i % n_pe_blocks),
    # forced at small size by lowering the row-tile target.
    x3 = jax.random.normal(jax.random.PRNGKey(2), (batch, 16, 128), dtype=jnp.float32)
    pe3 = _build_pe(16, 128)
    out3 = jax.block_until_ready(
        positional_encoding(x3, pe3, p=dropout_p, training=False, row_tile_target=8))
    assert jnp.allclose(out3, x3 + pe3[:, :16, :], atol=1e-6), "intra-batch tiling mismatch"

    print("KERNEL_OK")
</pallas_src>

<mosaic_0001>
module attributes {stable_mosaic.version = 11 : i64} {
  func.func @_pe_add_kernel(%arg0: i32, %arg1: memref<1xi32, #tpu.memory_space<smem>>, %arg2: memref<8x128xf32, #tpu.memory_space<vmem>>, %arg3: memref<8x128xf32, #tpu.memory_space<vmem>>, %arg4: memref<8x128xf32, #tpu.memory_space<vmem>>) attributes {dimension_semantics = [#tpu.dimension_semantics<parallel>], iteration_bounds = array<i64: 2>, scalar_prefetch = 1 : i64, scratch_operands = 0 : i64, tpu.core_type = #tpu.core_type<tc>, window_params = [{transform_indices = @transform_0, window_bounds = array<i64: 8, 128>}, {pipeline_mode = #tpu.pipeline_mode<synchronous>, transform_indices = @transform_1, window_bounds = array<i64: 8, 128>}, {transform_indices = @transform_2, window_bounds = array<i64: 8, 128>}]} {
    %c0 = arith.constant 0 : index
    %c0_0 = arith.constant 0 : index
    %0 = vector.load %arg2[%c0, %c0_0] : memref<8x128xf32, #tpu.memory_space<vmem>>, vector<8x128xf32>
    %c0_1 = arith.constant 0 : index
    %c0_2 = arith.constant 0 : index
    %1 = vector.load %arg3[%c0_1, %c0_2] : memref<8x128xf32, #tpu.memory_space<vmem>>, vector<8x128xf32>
    %2 = arith.addf %0, %1 : vector<8x128xf32>
    %c0_3 = arith.constant 0 : index
    %c0_4 = arith.constant 0 : index
    %3 = vector.load %arg4[%c0_3, %c0_4] : memref<8x128xf32, #tpu.memory_space<vmem>>, vector<8x128xf32>
    tpu.vector_store %arg4[%c0_3, %c0_4], %2 {strides = array<i32>} : memref<8x128xf32, #tpu.memory_space<vmem>>, vector<8x128xf32>,
    return
  }
  func.func @transform_0(%arg0: i32, %arg1: memref<1xi32, #tpu.memory_space<smem>>) -> (i32, i32) {
    %c0_i32 = arith.constant 0 : i32
    %c0_i32_0 = arith.constant 0 : i32
    return %arg0, %c0_i32 : i32, i32
  }
  func.func @transform_1(%arg0: i32, %arg1: memref<1xi32, #tpu.memory_space<smem>>) -> (i32, i32) {
    %c0_i32 = arith.constant 0 : i32
    %c0_i32_0 = arith.constant 0 : i32
    %c0_i32_1 = arith.constant 0 : i32
    return %c0_i32, %c0_i32_0 : i32, i32
  }
  func.func @transform_2(%arg0: i32, %arg1: memref<1xi32, #tpu.memory_space<smem>>) -> (i32, i32) {
    %c0_i32 = arith.constant 0 : i32
    %c0_i32_0 = arith.constant 0 : i32
    return %arg0, %c0_i32 : i32, i32
  }
}

</mosaic_0001>

<llo_original>
// kernel: tpu_custom_call.1
$region0: #{tpu_custom_call.1}
  #allocation0 [shape = 'u32[]', space=smem, size = 0x4, offset = 0x4, fixed_abs, tag = 'smem constant byte address 0x4 - core index']
  #allocation1 [shape = 'u32[144,128]{1,0:T(1,128)}', space=vmem, size = 0x12000, scoped, tag = 'internal scratch']
  #allocation2 [shape = 's32[1]{0}', space=sflag, size = 0x4, scoped, tag = 'scoped memory for tpu_custom_call.1']
  #allocation3 [shape = 's32[1]{0:T(128)S(6)}', space=smem, size = 0x200, scoped, tag = 'prefetched SMEM operand 0']
  %s0 = inlined_call_operand.<no memory space> [shape: s32[1], index: 0, kind: input, shape index: {}]
  %s1 = inlined_call_operand.hbm [shape: f32[16,128], index: 1, kind: input, shape index: {}]
  %s2 = inlined_call_operand.hbm [shape: f32[8,128], index: 2, kind: input, shape index: {}]
  %s3 = inlined_call_operand.hbm [shape: f32[16,128], index: 3, kind: output, shape index: {}]
  %s4 = sld [smem:[#allocation0]]
  $region49: #{tpu_custom_call.1} parent=0
    _
  %s6 = ssub.s32 1, %s4
  %s7 = scalar_select 0, %s6, %s4
  %8 = sst [smem:[#allocation3]] %s0
  $region1: #{tpu_custom_call.1} parent=0
    #allocation4 [shape = 'u8[8192]{0}', space=vmem, size = 0x2000, scoped, tag = 'input window, operand 1']
    #allocation5 [shape = 's32[2]{0}', space=sflag, size = 0x8, scoped, tag = 'scoped memory for tpu_custom_call.1']
    #allocation6 [shape = 's32[2]{0}', space=sflag, size = 0x8, scoped, tag = 'scoped memory for tpu_custom_call.1']
    #allocation7 [shape = 'u8[4096]{0}', space=vmem, size = 0x1000, scoped, tag = 'input window, operand 2, single buffered']
    #allocation8 [shape = 's32[1]{0}', space=sflag, size = 0x4, scoped, tag = 'scoped memory for tpu_custom_call.1']
    #allocation9 [shape = 'u8[8192]{0}', space=vmem, size = 0x2000, scoped, tag = 'output window, operand 0']
    %9 = vsyncpa [#allocation5], 0
    %s10 = scalar_lea.sflag [#allocation5], 1
    %11 = vsyncpa %s10, 0
    %12 = vsyncpa [#allocation8], 0
    %13 = vsyncpa [#allocation6], 0
    %s14 = scalar_lea.sflag [#allocation6], 1
    %15 = vsyncpa %s14, 0
    loop: start=0, step=1, limit=4
    $region2: #{tpu_custom_call.1} parent=1 // loop_pre_header
      _
    $region3: #{tpu_custom_call.1} parent=1 // loop_header
      %s17 = sphi 0, %s21
      %p18 = scmp.ge.s32.totalorder %s17, 4
      %s27 = sphi 0, %s29
      %s30 = sphi 0, %s27
      %s31 = sphi 0, %s30
      %s47 = sphi 0, %s31
      %s51 = sphi 0, %s51
      %s53 = sphi 0, %s51
      %s54 = sphi 0, %s53
      %s68 = sphi 0, %s54
      %s74 = sphi 0, %s76
      %s77 = sphi 0, %s74
      %s78 = sphi 0, %s77
      %s94 = sphi 0, %s78
    $region4: #{tpu_custom_call.1} parent=1 // loop_header_branch
      %20 = sbr.rel (%p18) target = $region8
    $region5: #{tpu_custom_call.1} parent=1 // loop_body
      %s22 = ssub.s32 %s17, 1
      %s23 = ssub.s32 %s17, 2
      %s24 = sadd.s32 %s17, 1
      %s25 = ssub.s32 %s17, %s24
      %p26 = scmp.eq.s32.totalorder %s25, 0
      %s28 = sadd.s32 %s27, 1
      %s29 = scalar_select %p26, %s27, %s28
      %p32 = pneg %p26
      %p33 = scmp.eq.s32.totalorder %s17, 1
      %p34 = por %p32, %p33
      %p35 = scmp.ne.s32.totalorder %s27, %s30
      %p36 = scmp.eq.s32.totalorder %s17, 0
      %p37 = por %p35, %p36
      %p38 = scmp.ne.s32.totalorder %s27, %s30
      %p39 = scmp.eq.s32.totalorder %s22, 1
      %p40 = por %p38, %p39
      %p41 = scmp.ne.s32.totalorder %s30, %s31
      %p42 = scmp.eq.s32.totalorder %s22, 0
      %p43 = por %p41, %p42
      %p44 = scmp.ne.s32.totalorder %s30, %s31
      %p45 = scmp.eq.s32.totalorder %s23, 1
      %p46 = por %p44, %p45
      %p48 = scmp.ne.s32.totalorder %s31, %s47
      %p49 = scmp.eq.s32.totalorder %s23, 0
      %p50 = por %p48, %p49
      %s52 = sadd.s32 %s51, 1
      %p55 = scmp.eq.s32.totalorder %s17, 1
      %p56 = scmp.ne.s32.totalorder %s51, %s53
      %p57 = scmp.eq.s32.totalorder %s17, 0
      %p58 = por %p56, %p57
      %p59 = scmp.ne.s32.totalorder %s51, %s53
      %p60 = scmp.eq.s32.totalorder %s22, 1
      %p61 = por %p59, %p60
      %p62 = scmp.ne.s32.totalorder %s53, %s54
      %p63 = scmp.eq.s32.totalorder %s22, 0
      %p64 = por %p62, %p63
      %p65 = scmp.ne.s32.totalorder %s53, %s54
      %p66 = scmp.eq.s32.totalorder %s23, 1
      %p67 = por %p65, %p66
      %p69 = scmp.ne.s32.totalorder %s54, %s68
      %p70 = scmp.eq.s32.totalorder %s23, 0
      %p71 = por %p69, %p70
      %s72 = ssub.s32 %s17, %s24
      %p73 = scmp.eq.s32.totalorder %s72, 0
      %s75 = sadd.s32 %s74, 1
      %s76 = scalar_select %p73, %s74, %s75
      %p79 = pneg %p73
      %p80 = scmp.eq.s32.totalorder %s17, 1
      %p81 = por %p79, %p80
      %p82 = scmp.ne.s32.totalorder %s74, %s77
      %p83 = scmp.eq.s32.totalorder %s17, 0
      %p84 = por %p82, %p83
      %p85 = scmp.ne.s32.totalorder %s74, %s77
      %p86 = scmp.eq.s32.totalorder %s22, 1
      %p87 = por %p85, %p86
      %p88 = scmp.ne.s32.totalorder %s77, %s78
      %p89 = scmp.eq.s32.totalorder %s22, 0
      %p90 = por %p88, %p89
      %p91 = scmp.ne.s32.totalorder %s77, %s78
      %p92 = scmp.eq.s32.totalorder %s23, 1
      %p93 = por %p91, %p92
      %p95 = scmp.ne.s32.totalorder %s78, %s94
      %p96 = scmp.eq.s32.totalorder %s23, 0
      %p97 = por %p95, %p96
      %p98 = scmp.le.s32.totalorder 1, %s17
      %p99 = scmp.lt.s32.totalorder %s17, 3
      %p100 = pnand %p98, %p99
      %p101 = pneg %p100
      // Predicated region
      $region9: #{tpu_custom_call.1} parent=5 // pred_check
        _
      $region10: #{tpu_custom_call.1} parent=5 // pred_check_branch
        %103 = sbr.rel (%p100) target = $region12
      $region11: #{tpu_custom_call.1} parent=5 // pred_region
        %s104 = ssub.s32 %s17, 1
        // Predicated region
        $region13: #{tpu_custom_call.1} parent=11 // pred_check
          %p105 = pneg %p64
        $region14: #{tpu_custom_call.1} parent=11 // pred_check_branch
          %107 = sbr.rel (%p105) target = $region16
        $region15: #{tpu_custom_call.1} parent=11 // pred_region
          %s109 = ssub.s32 128, 128
          %110 = vsyncadd [#allocation8], %s109
          %s112 = sshll.u32 [#allocation7], 4
          %s113 = int_to_ptr.vmem [resolvable:$true] %s112
          %115 = dma.hbm_to_vmem [thread:$0]  %s2, 128, %s113, [#allocation8]
        $region16: #{tpu_custom_call.1} parent=11 // pred_fallthru
          _
      $region12: #{tpu_custom_call.1} parent=5 // pred_fallthru
        _
      %p116 = scmp.lt.s32.totalorder %s17, 2
      // Predicated region
      $region17: #{tpu_custom_call.1} parent=5 // pred_check
        %p117 = pneg %p116
      $region18: #{tpu_custom_call.1} parent=5 // pred_check_branch
        %119 = sbr.rel (%p117) target = $region20
      $region19: #{tpu_custom_call.1} parent=5 // pred_region
        // Predicated region
        $region21: #{tpu_custom_call.1} parent=19 // pred_check
          %p120 = pneg %p37
        $region22: #{tpu_custom_call.1} parent=19 // pred_check_branch
          %122 = sbr.rel (%p120) target = $region24
        $region23: #{tpu_custom_call.1} parent=19 // pred_region
          %s123 = sand.u32 %s27, 1
          %s124 = scalar_lea.sflag [#allocation5], %s123
          %s125 = sand.u32 %s27, 1
          %s126 = smul.addr %s125, 8
          %s127 = scalar_lea.vmem [#allocation4], %s126
          %s129 = ssub.s32 128, 128
          %130 = vsyncadd %s124, %s129
          %s131 = smul.addr %s17, 128
          %s132 = scalar_lea.hbm %s1, %s131
          %s134 = sshll.u32 %s127, 4
          %s135 = int_to_ptr.vmem [resolvable:$true] %s134
          %137 = dma.hbm_to_vmem [thread:$0]  %s132, 128, %s135, %s124
        $region24: #{tpu_custom_call.1} parent=19 // pred_fallthru
          _
      $region20: #{tpu_custom_call.1} parent=5 // pred_fallthru
        _
      %p138 = scmp.le.s32.totalorder 1, %s17
      %p139 = scmp.lt.s32.totalorder %s17, 3
      %p140 = pnand %p138, %p139
      %p141 = pneg %p140
      // Predicated region
      $region25: #{tpu_custom_call.1} parent=5 // pred_check
        _
      $region26: #{tpu_custom_call.1} parent=5 // pred_check_branch
        %143 = sbr.rel (%p140) target = $region28
      $region27: #{tpu_custom_call.1} parent=5 // pred_region
        %s144 = ssub.s32 %s17, 1
        %s145 = sand.u32 %s30, 1
        %s146 = scalar_lea.sflag [#allocation5], %s145
        %s147 = sand.u32 %s30, 1
        %s148 = smul.addr %s147, 8
        %s149 = scalar_lea.vmem [#allocation4], %s148
        // Predicated region
        $region29: #{tpu_custom_call.1} parent=27 // pred_check
          %p150 = pneg %p43
        $region30: #{tpu_custom_call.1} parent=27 // pred_check_branch
          %152 = sbr.rel (%p150) target = $region32
        $region31: #{tpu_custom_call.1} parent=27 // pred_region
          %153 = dma.done %s146, 128
        $region32: #{tpu_custom_call.1} parent=27 // pred_fallthru
          _
        // Predicated region
        $region33: #{tpu_custom_call.1} parent=27 // pred_check
          %p154 = pneg %p64
        $region34: #{tpu_custom_call.1} parent=27 // pred_check_branch
          %156 = sbr.rel (%p154) target = $region36
        $region35: #{tpu_custom_call.1} parent=27 // pred_region
          %157 = dma.done [#allocation8], 128
        $region36: #{tpu_custom_call.1} parent=27 // pred_fallthru
          _
        %s158 = sand.u32 %s30, 1
        %s159 = scalar_lea.sflag [#allocation5], %s158
        %s160 = sand.u32 %s30, 1
        %s161 = smul.addr %s160, 8
        %s162 = scalar_lea.vmem [#allocation4], %s161
        %p163 = pneg %p43
        %p164 = pneg %p40
        %p165 = pneg %p64
        %p166 = pneg %p61
        %p167 = pneg %p90
        %p168 = pneg %p87
        %s169 = sand.u32 %s77, 1
        %s170 = scalar_lea.sflag [#allocation6], %s169
        %s171 = sand.u32 %s77, 1
        %s172 = smul.addr %s171, 8
        %s173 = scalar_lea.vmem [#allocation9], %s172
        %v174 = vld [vmem:[%s149] sm:$0xff]
        %v175 = vld [vmem:[#allocation7] sm:$0xff]
        %v176 = vadd.f32 %v174, %v175
        %177 = vst [vmem:[%s173] sm:$0xff] %v176
        %s178 = sand.u32 %s77, 1
        %s179 = scalar_lea.sflag [#allocation6], %s178
        %s180 = sand.u32 %s77, 1
        %s181 = smul.addr %s180, 8
        %s182 = scalar_lea.vmem [#allocation9], %s181
        // Predicated region
        $region37: #{tpu_custom_call.1} parent=27 // pred_check
          %p183 = pneg %p87
        $region38: #{tpu_custom_call.1} parent=27 // pred_check_branch
          %185 = sbr.rel (%p183) target = $region40
        $region39: #{tpu_custom_call.1} parent=27 // pred_region
          %s187 = ssub.s32 128, 128
          %188 = vsyncadd %s179, %s187
          %s189 = smul.addr %s22, 128
          %s190 = scalar_lea.hbm %s3, %s189
          %s192 = sshll.u32 %s182, 4
          %s193 = int_to_ptr.vmem [resolvable:$true] %s192
          %195 = dma.vmem_to_hbm [thread:$0]  %s193, 128, %s190, %s179
        $region40: #{tpu_custom_call.1} parent=27 // pred_fallthru
          _
      $region28: #{tpu_custom_call.1} parent=5 // pred_fallthru
        _
      %p196 = scmp.le.s32.totalorder 2, %s17
      // Predicated region
      $region41: #{tpu_custom_call.1} parent=5 // pred_check
        %p197 = pneg %p196
      $region42: #{tpu_custom_call.1} parent=5 // pred_check_branch
        %199 = sbr.rel (%p197) target = $region44
      $region43: #{tpu_custom_call.1} parent=5 // pred_region
        %s200 = ssub.s32 %s17, 2
        // Predicated region
        $region45: #{tpu_custom_call.1} parent=43 // pred_check
          %p201 = pneg %p93
        $region46: #{tpu_custom_call.1} parent=43 // pred_check_branch
          %203 = sbr.rel (%p201) target = $region48
        $region47: #{tpu_custom_call.1} parent=43 // pred_region
          %s204 = sand.u32 %s78, 1
          %s205 = scalar_lea.sflag [#allocation6], %s204
          %s206 = sand.u32 %s78, 1
          %s207 = smul.addr %s206, 8
          %s208 = scalar_lea.vmem [#allocation9], %s207
          %209 = dma.done %s205, 128
        $region48: #{tpu_custom_call.1} parent=43 // pred_fallthru
          _
      $region44: #{tpu_custom_call.1} parent=5 // pred_fallthru
        _
    $region6: #{tpu_custom_call.1} parent=1 // loop_footer
      %s21 = sadd.s32 1, %s17
    $region7: #{tpu_custom_call.1} parent=1 // loop_footer_branch
      %16 = sbr.rel target = $region3
    $region8: #{tpu_custom_call.1} parent=1 // loop_exit
      _
    %210 = vsyncpa [#allocation5], 1
    %s211 = scalar_lea.sflag [#allocation5], 1
    %212 = vsyncpa %s211, 1
    %213 = vsyncpa [#allocation8], 1
    %214 = vsyncpa [#allocation6], 1
    %s215 = scalar_lea.sflag [#allocation6], 1
    %216 = vsyncpa %s215, 1

</llo_original>
